<compile_context>
chip_gen: v5e
topology: v5e:2x2
jax: 0.10.0
libtpu: 0.0.40
codegen_flags: <defaults>
</compile_context>

<pallas_src>
import functools

import jax
import jax.numpy as jnp
from jax import lax
from jax.experimental import pallas as pl
from jax.experimental.pallas import tpu as pltpu

C_IN = 64
C_OUT = 32
CONVS = (
    (5, 2),   # (kernel_size, dilation) -> conv1
    (4, 3),   #                          -> conv2
    (3, 4),   #                          -> conv3
)
SE_HIDDEN = C_OUT // 16   # SELayer(channel=32, reduction=16) -> 2
BN_EPS = 1e-5

_CPARAMS = pltpu.CompilerParams(
    dimension_semantics=("parallel",),
    vmem_limit_bytes=32 * 1024 * 1024,
)


def _branch_conv(xb, w_flat, k_size, dil, l_out):
    """im2col conv for one branch: (32, K*64) @ (K*64, l_out) -> (32, l_out)."""
    cols = jnp.concatenate(
        [xb[:, k * dil:k * dil + l_out] for k in range(k_size)], axis=0)
    return jnp.dot(w_flat, cols, preferred_element_type=jnp.float32)


def _stats_kernel(x_ref, w1_ref, w2_ref, w3_ref, stats_ref, *, seq_len):
    """Per-batch, per-branch channel sum and sum-of-squares (one-pass stats)."""
    xb = x_ref[0]                                   # (Cin, L), channels on sublane
    w_refs = (w1_ref, w2_ref, w3_ref)
    sums, sqs = [], []
    for i, (k_size, dil) in enumerate(CONVS):
        l_out = seq_len - dil * (k_size - 1)
        h = _branch_conv(xb, w_refs[i][...], k_size, dil, l_out)   # (32, l_out)
        sums.append(jnp.sum(h, axis=1, keepdims=True))
        sqs.append(jnp.sum(h * h, axis=1, keepdims=True))
    stats_ref[0] = jnp.concatenate(sums + sqs, axis=1)             # (32, 6)


def _apply_kernel(x_ref, w1_ref, w2_ref, w3_ref, scale_ref, off_ref,
                  wfc1_ref, wfc2_ref, o_ref, *, seq_len):
    """Conv -> fused BN(scale, offset) -> ReLU -> SE gate -> write NCL output."""
    xb = x_ref[0]                                   # (Cin, L)
    w_refs = (w1_ref, w2_ref, w3_ref)

    acts = []
    pooled_sum = jnp.zeros((C_OUT, 1), jnp.float32)
    l_tot = 0
    for i, (k_size, dil) in enumerate(CONVS):
        l_out = seq_len - dil * (k_size - 1)
        h = _branch_conv(xb, w_refs[i][...], k_size, dil, l_out)   # (32, l_out)
        a = jnp.maximum(h * scale_ref[:, i:i + 1] + off_ref[:, i:i + 1], 0.0)
        acts.append((a, l_out))
        pooled_sum = pooled_sum + jnp.sum(a, axis=1, keepdims=True)
        l_tot += l_out

    # SE: avg-pool over concatenated length, Linear(32->2), ReLU,
    # Linear(2->32), Sigmoid.
    pooled = pooled_sum * (1.0 / l_tot)                            # (32, 1)
    z = jnp.maximum(jnp.dot(wfc1_ref[...], pooled,
                            preferred_element_type=jnp.float32), 0.0)   # (2, 1)
    t = jnp.dot(wfc2_ref[...], z, preferred_element_type=jnp.float32)   # (32, 1)
    y = 1.0 / (1.0 + jnp.exp(-t))

    # Write gated branches directly into the concatenated output (no concat).
    off = 0
    for a, l_out in acts:
        o_ref[0, :, off:off + l_out] = a * y
        off += l_out


def msa_forward(x_ncl, params):
    """x_ncl: (B, 64, L) PyTorch NCL layout. Returns (B, 32, L_total) NCL."""
    B, cin, L = x_ncl.shape
    assert cin == C_IN
    x = x_ncl.astype(jnp.float32)
    l_outs = [L - d * (k - 1) for (k, d) in CONVS]
    l_tot = sum(l_outs)

    x_spec = pl.BlockSpec((1, C_IN, L), lambda b: (b, 0, 0))
    w_specs = [pl.BlockSpec((C_OUT, k * C_IN), lambda b: (0, 0))
               for (k, _) in CONVS]

    def full2d(shape):
        return pl.BlockSpec(shape, lambda b: (0, 0))

    # Pass 1: per-batch partial BN statistics (grid over batch, parallel).
    stats = pl.pallas_call(
        functools.partial(_stats_kernel, seq_len=L),
        out_shape=jax.ShapeDtypeStruct((B, C_OUT, 2 * len(CONVS)), jnp.float32),
        grid=(B,),
        in_specs=[x_spec] + w_specs,
        out_specs=pl.BlockSpec((1, C_OUT, 2 * len(CONVS)), lambda b: (b, 0, 0)),
        compiler_params=_CPARAMS,
    )(x, params["w1f"], params["w2f"], params["w3f"])

    # Tiny glue (32x6 values): reduce over batch, fold BN into scale/offset.
    s = jnp.sum(stats, axis=0)                                     # (32, 6)
    n = jnp.asarray([B * lo for lo in l_outs], jnp.float32)        # (3,)
    mean = s[:, :3] / n
    var = s[:, 3:] / n - mean * mean
    scale = params["gamma"] * lax.rsqrt(var + BN_EPS)              # (32, 3)
    offset = params["beta"] - mean * scale                         # (32, 3)

    # Pass 2: conv + fused BN + ReLU + SE gate, written straight to NCL output.
    out = pl.pallas_call(
        functools.partial(_apply_kernel, seq_len=L),
        out_shape=jax.ShapeDtypeStruct((B, C_OUT, l_tot), jnp.float32),
        grid=(B,),
        in_specs=[x_spec] + w_specs + [
            full2d((C_OUT, 3)), full2d((C_OUT, 3)),
            full2d((SE_HIDDEN, C_OUT)), full2d((C_OUT, SE_HIDDEN))],
        out_specs=pl.BlockSpec((1, C_OUT, l_tot), lambda b: (b, 0, 0)),
        compiler_params=_CPARAMS,
    )(x, params["w1f"], params["w2f"], params["w3f"],
      scale, offset, params["wfc1"], params["wfc2"])
    return out


def msa_reference(x_ncl, params):
    """Pure-JAX reference with PyTorch semantics (includes the conv bias)."""
    B, _, L = x_ncl.shape
    x = x_ncl.astype(jnp.float32)
    outs = []
    for i, (k_size, dil) in enumerate(CONVS):
        l_out = L - dil * (k_size - 1)
        w = params[f"w{i + 1}"]                                    # (32, 64, K)
        acc = jnp.zeros((B, C_OUT, l_out), jnp.float32)
        for k in range(k_size):
            xs = x[:, :, k * dil:k * dil + l_out]                  # (B, 64, l_out)
            acc = acc + jnp.einsum("bcl,oc->bol", xs, w[:, :, k])
        acc = acc + params["cb"][:, i][None, :, None]              # conv bias
        mean = jnp.mean(acc, axis=(0, 2), keepdims=True)
        var = jnp.mean((acc - mean) ** 2, axis=(0, 2), keepdims=True)
        h = (acc - mean) / jnp.sqrt(var + BN_EPS)
        h = (h * params["gamma"][:, i][None, :, None]
             + params["beta"][:, i][None, :, None])
        outs.append(jnp.maximum(h, 0.0))
    cat = jnp.concatenate(outs, axis=2)                            # (B, 32, l_tot)
    pooled = jnp.mean(cat, axis=2)                                 # (B, 32)
    z = jnp.maximum(pooled @ params["wfc1"].T, 0.0)                # (B, 2)
    y = jax.nn.sigmoid(z @ params["wfc2"].T)                       # (B, 32)
    return cat * y[:, :, None]


def init_params(key):
    ks = jax.random.split(key, 8)
    params = {}
    for i, (k_size, _) in enumerate(CONVS):
        std = 1.0 / (C_IN * k_size) ** 0.5
        # PyTorch Conv1d weight layout: (Cout, Cin, K).
        w = jax.random.normal(ks[i], (C_OUT, C_IN, k_size), jnp.float32) * std
        params[f"w{i + 1}"] = w
        # im2col LHS: (Cout, K*Cin), k-major / cin-minor to match the column stack.
        params[f"w{i + 1}f"] = jnp.transpose(w, (0, 2, 1)).reshape(
            C_OUT, k_size * C_IN)
    params["cb"] = 0.05 * jax.random.normal(ks[3], (C_OUT, 3), jnp.float32)
    params["gamma"] = 1.0 + 0.1 * jax.random.normal(ks[4], (C_OUT, 3), jnp.float32)
    params["beta"] = 0.1 * jax.random.normal(ks[5], (C_OUT, 3), jnp.float32)
    # nn.Linear(32, 2) weight (2, 32); nn.Linear(2, 32) weight (32, 2). No bias.
    params["wfc1"] = jax.random.normal(ks[6], (SE_HIDDEN, C_OUT),
                                       jnp.float32) / (C_OUT ** 0.5)
    params["wfc2"] = jax.random.normal(ks[7], (C_OUT, SE_HIDDEN),
                                       jnp.float32) / (SE_HIDDEN ** 0.5)
    return params


if __name__ == "__main__":
    key = jax.random.PRNGKey(0)
    k_param, k_x = jax.random.split(key)
    params = init_params(k_param)

    # L=11 -> the three branches produce lengths 3, 2, 3 (total 8),
    # matching the shapes printed by the original SELayer.
    B, L = 2, 11
    x = jax.random.normal(k_x, (B, C_IN, L), jnp.float32)

    out = jax.block_until_ready(msa_forward(x, params))
    ref = jax.block_until_ready(msa_reference(x, params))

    assert out.shape == (B, C_OUT, 8), out.shape
    max_err = float(jnp.max(jnp.abs(out - ref)))
    assert max_err < 1e-3, f"mismatch vs reference: {max_err}"
    print("KERNEL_OK")
</pallas_src>

<mosaic_0001>
module attributes {stable_mosaic.version = 11 : i64} {
  func.func @_stats_kernel(%arg0: i32, %arg1: memref<1x64x11xf32, #tpu.memory_space<vmem>>, %arg2: memref<32x320xf32, #tpu.memory_space<vmem>>, %arg3: memref<32x256xf32, #tpu.memory_space<vmem>>, %arg4: memref<32x192xf32, #tpu.memory_space<vmem>>, %arg5: memref<1x32x6xf32, #tpu.memory_space<vmem>>) attributes {dimension_semantics = [#tpu.dimension_semantics<parallel>], iteration_bounds = array<i64: 2>, scalar_prefetch = 0 : i64, scratch_operands = 0 : i64, tpu.core_type = #tpu.core_type<tc>, window_params = [{transform_indices = @transform_0, window_bounds = array<i64: 1, 64, 11>}, {pipeline_mode = #tpu.pipeline_mode<synchronous>, transform_indices = @transform_1, window_bounds = array<i64: 32, 320>}, {pipeline_mode = #tpu.pipeline_mode<synchronous>, transform_indices = @transform_2, window_bounds = array<i64: 32, 256>}, {pipeline_mode = #tpu.pipeline_mode<synchronous>, transform_indices = @transform_3, window_bounds = array<i64: 32, 192>}, {transform_indices = @transform_4, window_bounds = array<i64: 1, 32, 6>}]} {
    %c0 = arith.constant 0 : index
    %c0_0 = arith.constant 0 : index
    %c0_1 = arith.constant 0 : index
    %0 = vector.load %arg1[%c0, %c0_0, %c0_1] : memref<1x64x11xf32, #tpu.memory_space<vmem>>, vector<1x64x11xf32>
    %1 = vector.shape_cast %0 : vector<1x64x11xf32> to vector<64x11xf32>
    %c0_2 = arith.constant 0 : index
    %c0_3 = arith.constant 0 : index
    %2 = vector.load %arg2[%c0_2, %c0_3] : memref<32x320xf32, #tpu.memory_space<vmem>>, vector<32x320xf32>
    %3 = vector.extract_strided_slice %1 {offsets = [0, 0], sizes = [64, 3], strides = [1, 1]} : vector<64x11xf32> to vector<64x3xf32>
    %4 = vector.extract_strided_slice %1 {offsets = [0, 2], sizes = [64, 3], strides = [1, 1]} : vector<64x11xf32> to vector<64x3xf32>
    %5 = vector.extract_strided_slice %1 {offsets = [0, 4], sizes = [64, 3], strides = [1, 1]} : vector<64x11xf32> to vector<64x3xf32>
    %6 = vector.extract_strided_slice %1 {offsets = [0, 6], sizes = [64, 3], strides = [1, 1]} : vector<64x11xf32> to vector<64x3xf32>
    %7 = vector.extract_strided_slice %1 {offsets = [0, 8], sizes = [64, 3], strides = [1, 1]} : vector<64x11xf32> to vector<64x3xf32>
    %8 = tpu.concatenate %3, %4, %5, %6, %7 in 0 : vector<64x3xf32>, vector<64x3xf32>, vector<64x3xf32>, vector<64x3xf32>, vector<64x3xf32> -> vector<320x3xf32>
    %cst = arith.constant dense<0.000000e+00> : vector<32x3xf32>
    %9 = tpu.matmul %2, %8, %cst {dimension_numbers = #tpu.dot_dimension_numbers<[1], [0], [0], [1], [0, 0, 1, 1], [], []>} : vector<32x320xf32>, vector<320x3xf32>, vector<32x3xf32> -> vector<32x3xf32>
    %cst_4 = arith.constant dense<0.000000e+00> : vector<32xf32>
    %10 = vector.multi_reduction <add>, %9, %cst_4 [1] : vector<32x3xf32> to vector<32xf32>
    %11 = vector.shape_cast %10 : vector<32xf32> to vector<32x1xf32>
    %12 = arith.mulf %9, %9 : vector<32x3xf32>
    %cst_5 = arith.constant dense<0.000000e+00> : vector<32xf32>
    %13 = vector.multi_reduction <add>, %12, %cst_5 [1] : vector<32x3xf32> to vector<32xf32>
    %14 = vector.shape_cast %13 : vector<32xf32> to vector<32x1xf32>
    %c0_6 = arith.constant 0 : index
    %c0_7 = arith.constant 0 : index
    %15 = vector.load %arg3[%c0_6, %c0_7] : memref<32x256xf32, #tpu.memory_space<vmem>>, vector<32x256xf32>
    %16 = vector.extract_strided_slice %1 {offsets = [0, 0], sizes = [64, 2], strides = [1, 1]} : vector<64x11xf32> to vector<64x2xf32>
    %17 = vector.extract_strided_slice %1 {offsets = [0, 3], sizes = [64, 2], strides = [1, 1]} : vector<64x11xf32> to vector<64x2xf32>
    %18 = vector.extract_strided_slice %1 {offsets = [0, 6], sizes = [64, 2], strides = [1, 1]} : vector<64x11xf32> to vector<64x2xf32>
    %19 = vector.extract_strided_slice %1 {offsets = [0, 9], sizes = [64, 2], strides = [1, 1]} : vector<64x11xf32> to vector<64x2xf32>
    %20 = tpu.concatenate %16, %17, %18, %19 in 0 : vector<64x2xf32>, vector<64x2xf32>, vector<64x2xf32>, vector<64x2xf32> -> vector<256x2xf32>
    %cst_8 = arith.constant dense<0.000000e+00> : vector<32x2xf32>
    %21 = tpu.matmul %15, %20, %cst_8 {dimension_numbers = #tpu.dot_dimension_numbers<[1], [0], [0], [1], [0, 0, 1, 1], [], []>} : vector<32x256xf32>, vector<256x2xf32>, vector<32x2xf32> -> vector<32x2xf32>
    %cst_9 = arith.constant dense<0.000000e+00> : vector<32xf32>
    %22 = vector.multi_reduction <add>, %21, %cst_9 [1] : vector<32x2xf32> to vector<32xf32>
    %23 = vector.shape_cast %22 : vector<32xf32> to vector<32x1xf32>
    %24 = arith.mulf %21, %21 : vector<32x2xf32>
    %cst_10 = arith.constant dense<0.000000e+00> : vector<32xf32>
    %25 = vector.multi_reduction <add>, %24, %cst_10 [1] : vector<32x2xf32> to vector<32xf32>
    %26 = vector.shape_cast %25 : vector<32xf32> to vector<32x1xf32>
    %c0_11 = arith.constant 0 : index
    %c0_12 = arith.constant 0 : index
    %27 = vector.load %arg4[%c0_11, %c0_12] : memref<32x192xf32, #tpu.memory_space<vmem>>, vector<32x192xf32>
    %28 = vector.extract_strided_slice %1 {offsets = [0, 0], sizes = [64, 3], strides = [1, 1]} : vector<64x11xf32> to vector<64x3xf32>
    %29 = vector.extract_strided_slice %1 {offsets = [0, 4], sizes = [64, 3], strides = [1, 1]} : vector<64x11xf32> to vector<64x3xf32>
    %30 = vector.extract_strided_slice %1 {offsets = [0, 8], sizes = [64, 3], strides = [1, 1]} : vector<64x11xf32> to vector<64x3xf32>
    %31 = tpu.concatenate %28, %29, %30 in 0 : vector<64x3xf32>, vector<64x3xf32>, vector<64x3xf32> -> vector<192x3xf32>
    %cst_13 = arith.constant dense<0.000000e+00> : vector<32x3xf32>
    %32 = tpu.matmul %27, %31, %cst_13 {dimension_numbers = #tpu.dot_dimension_numbers<[1], [0], [0], [1], [0, 0, 1, 1], [], []>} : vector<32x192xf32>, vector<192x3xf32>, vector<32x3xf32> -> vector<32x3xf32>
    %cst_14 = arith.constant dense<0.000000e+00> : vector<32xf32>
    %33 = vector.multi_reduction <add>, %32, %cst_14 [1] : vector<32x3xf32> to vector<32xf32>
    %34 = vector.shape_cast %33 : vector<32xf32> to vector<32x1xf32>
    %35 = arith.mulf %32, %32 : vector<32x3xf32>
    %cst_15 = arith.constant dense<0.000000e+00> : vector<32xf32>
    %36 = vector.multi_reduction <add>, %35, %cst_15 [1] : vector<32x3xf32> to vector<32xf32>
    %37 = vector.shape_cast %36 : vector<32xf32> to vector<32x1xf32>
    %38 = tpu.concatenate %11, %23, %34, %14, %26, %37 in 1 : vector<32x1xf32>, vector<32x1xf32>, vector<32x1xf32>, vector<32x1xf32>, vector<32x1xf32>, vector<32x1xf32> -> vector<32x6xf32>
    %c0_16 = arith.constant 0 : index
    %c0_17 = arith.constant 0 : index
    %c0_18 = arith.constant 0 : index
    %39 = vector.load %arg5[%c0_16, %c0_17, %c0_18] : memref<1x32x6xf32, #tpu.memory_space<vmem>>, vector<1x32x6xf32>
    %40 = vector.shape_cast %39 : vector<1x32x6xf32> to vector<32x6xf32>
    %41 = vector.shape_cast %38 : vector<32x6xf32> to vector<1x32x6xf32>
    tpu.vector_store %arg5[%c0_16, %c0_17, %c0_18], %41 {strides = array<i32>} : memref<1x32x6xf32, #tpu.memory_space<vmem>>, vector<1x32x6xf32>,
    return
  }
  func.func @transform_0(%arg0: i32) -> (i32, i32, i32) {
    %c0_i32 = arith.constant 0 : i32
    %c0_i32_0 = arith.constant 0 : i32
    %c0_i32_1 = arith.constant 0 : i32
    return %arg0, %c0_i32, %c0_i32_0 : i32, i32, i32
  }
  func.func @transform_1(%arg0: i32) -> (i32, i32) {
    %c0_i32 = arith.constant 0 : i32
    %c0_i32_0 = arith.constant 0 : i32
    %c0_i32_1 = arith.constant 0 : i32
    return %c0_i32, %c0_i32_0 : i32, i32
  }
  func.func @transform_2(%arg0: i32) -> (i32, i32) {
    %c0_i32 = arith.constant 0 : i32
    %c0_i32_0 = arith.constant 0 : i32
    %c0_i32_1 = arith.constant 0 : i32
    return %c0_i32, %c0_i32_0 : i32, i32
  }
  func.func @transform_3(%arg0: i32) -> (i32, i32) {
    %c0_i32 = arith.constant 0 : i32
    %c0_i32_0 = arith.constant 0 : i32
    %c0_i32_1 = arith.constant 0 : i32
    return %c0_i32, %c0_i32_0 : i32, i32
  }
  func.func @transform_4(%arg0: i32) -> (i32, i32, i32) {
    %c0_i32 = arith.constant 0 : i32
    %c0_i32_0 = arith.constant 0 : i32
    %c0_i32_1 = arith.constant 0 : i32
    return %arg0, %c0_i32, %c0_i32_0 : i32, i32, i32
  }
}

</mosaic_0001>

<llo_original>
// kernel: tpu_custom_call.1
$region0: #{tpu_custom_call.1}
  #allocation0 [shape = 'u32[]', space=smem, size = 0x4, offset = 0x4, fixed_abs, tag = 'smem constant byte address 0x4 - core index']
  #allocation1 [shape = 'u32[72,128]{1,0:T(1,128)}', space=vmem, size = 0x9000, scoped, tag = 'internal scratch']
  %s0 = inlined_call_operand.vmem [shape: f32[2,64,11], index: 0, kind: input, shape index: {}]
  %s1 = inlined_call_operand.vmem [shape: f32[32,320], index: 1, kind: input, shape index: {}]
  %s2 = inlined_call_operand.hbm [shape: f32[32,256], index: 2, kind: input, shape index: {}]
  %s3 = inlined_call_operand.hbm [shape: f32[32,192], index: 3, kind: input, shape index: {}]
  %s4 = inlined_call_operand.vmem [shape: f32[2,32,6], index: 4, kind: output, shape index: {}]
  %s5 = sld [smem:[#allocation0]]
  $region57: #{tpu_custom_call.1} parent=0
    _
  %s7 = ssub.s32 1, %s5
  %s8 = scalar_select 0, %s7, %s5
  $region1: #{tpu_custom_call.1} parent=0
    #allocation2 [shape = 'u8[32768]{0}', space=vmem, size = 0x8000, scoped, tag = 'input window, operand 2, single buffered']
    #allocation3 [shape = 's32[2]{0}', space=sflag, size = 0x8, scoped, tag = 'scoped memory for tpu_custom_call.1']
    #allocation4 [shape = 'u8[32768]{0}', space=vmem, size = 0x8000, scoped, tag = 'input window, operand 3, single buffered']
    #allocation5 [shape = 's32[1]{0}', space=sflag, size = 0x4, scoped, tag = 'scoped memory for tpu_custom_call.1']
    %9 = vsyncpa [#allocation3], 0
    %10 = vsyncpa [#allocation5], 0
    loop: start=0, step=1, limit=4
    $region2: #{tpu_custom_call.1} parent=1 // loop_pre_header
      _
    $region3: #{tpu_custom_call.1} parent=1 // loop_header
      %s12 = sphi 0, %s16
      %p13 = scmp.ge.s32.totalorder %s12, 4
      %s22 = sphi 0, %s24
      %s25 = sphi 0, %s22
      %s26 = sphi 0, %s25
      %s42 = sphi 0, %s26
      %s46 = sphi 0, %s46
      %s48 = sphi 0, %s46
      %s49 = sphi 0, %s48
      %s63 = sphi 0, %s49
      %s67 = sphi 0, %s67
      %s69 = sphi 0, %s67
      %s70 = sphi 0, %s69
      %s84 = sphi 0, %s70
      %s88 = sphi 0, %s88
      %s90 = sphi 0, %s88
      %s91 = sphi 0, %s90
      %s105 = sphi 0, %s91
      %s111 = sphi 0, %s113
      %s114 = sphi 0, %s111
      %s115 = sphi 0, %s114
      %s131 = sphi 0, %s115
    $region4: #{tpu_custom_call.1} parent=1 // loop_header_branch
      %15 = sbr.rel (%p13) target = $region8
    $region5: #{tpu_custom_call.1} parent=1 // loop_body
      %s17 = ssub.s32 %s12, 1
      %s18 = ssub.s32 %s12, 2
      %s19 = sadd.s32 %s12, 1
      %s20 = ssub.s32 %s12, %s19
      %p21 = scmp.eq.s32.totalorder %s20, 0
      %s23 = sadd.s32 %s22, 1
      %s24 = scalar_select %p21, %s22, %s23
      %p27 = pneg %p21
      %p28 = scmp.eq.s32.totalorder %s12, 1
      %p29 = por %p27, %p28
      %p30 = scmp.ne.s32.totalorder %s22, %s25
      %p31 = scmp.eq.s32.totalorder %s12, 0
      %p32 = por %p30, %p31
      %p33 = scmp.ne.s32.totalorder %s22, %s25
      %p34 = scmp.eq.s32.totalorder %s17, 1
      %p35 = por %p33, %p34
      %p36 = scmp.ne.s32.totalorder %s25, %s26
      %p37 = scmp.eq.s32.totalorder %s17, 0
      %p38 = por %p36, %p37
      %p39 = scmp.ne.s32.totalorder %s25, %s26
      %p40 = scmp.eq.s32.totalorder %s18, 1
      %p41 = por %p39, %p40
      %p43 = scmp.ne.s32.totalorder %s26, %s42
      %p44 = scmp.eq.s32.totalorder %s18, 0
      %p45 = por %p43, %p44
      %s47 = sadd.s32 %s46, 1
      %p50 = scmp.eq.s32.totalorder %s12, 1
      %p51 = scmp.ne.s32.totalorder %s46, %s48
      %p52 = scmp.eq.s32.totalorder %s12, 0
      %p53 = por %p51, %p52
      %p54 = scmp.ne.s32.totalorder %s46, %s48
      %p55 = scmp.eq.s32.totalorder %s17, 1
      %p56 = por %p54, %p55
      %p57 = scmp.ne.s32.totalorder %s48, %s49
      %p58 = scmp.eq.s32.totalorder %s17, 0
      %p59 = por %p57, %p58
      %p60 = scmp.ne.s32.totalorder %s48, %s49
      %p61 = scmp.eq.s32.totalorder %s18, 1
      %p62 = por %p60, %p61
      %p64 = scmp.ne.s32.totalorder %s49, %s63
      %p65 = scmp.eq.s32.totalorder %s18, 0
      %p66 = por %p64, %p65
      %s68 = sadd.s32 %s67, 1
      %p71 = scmp.eq.s32.totalorder %s12, 1
      %p72 = scmp.ne.s32.totalorder %s67, %s69
      %p73 = scmp.eq.s32.totalorder %s12, 0
      %p74 = por %p72, %p73
      %p75 = scmp.ne.s32.totalorder %s67, %s69
      %p76 = scmp.eq.s32.totalorder %s17, 1
      %p77 = por %p75, %p76
      %p78 = scmp.ne.s32.totalorder %s69, %s70
      %p79 = scmp.eq.s32.totalorder %s17, 0
      %p80 = por %p78, %p79
      %p81 = scmp.ne.s32.totalorder %s69, %s70
      %p82 = scmp.eq.s32.totalorder %s18, 1
      %p83 = por %p81, %p82
      %p85 = scmp.ne.s32.totalorder %s70, %s84
      %p86 = scmp.eq.s32.totalorder %s18, 0
      %p87 = por %p85, %p86
      %s89 = sadd.s32 %s88, 1
      %p92 = scmp.eq.s32.totalorder %s12, 1
      %p93 = scmp.ne.s32.totalorder %s88, %s90
      %p94 = scmp.eq.s32.totalorder %s12, 0
      %p95 = por %p93, %p94
      %p96 = scmp.ne.s32.totalorder %s88, %s90
      %p97 = scmp.eq.s32.totalorder %s17, 1
      %p98 = por %p96, %p97
      %p99 = scmp.ne.s32.totalorder %s90, %s91
      %p100 = scmp.eq.s32.totalorder %s17, 0
      %p101 = por %p99, %p100
      %p102 = scmp.ne.s32.totalorder %s90, %s91
      %p103 = scmp.eq.s32.totalorder %s18, 1
      %p104 = por %p102, %p103
      %p106 = scmp.ne.s32.totalorder %s91, %s105
      %p107 = scmp.eq.s32.totalorder %s18, 0
      %p108 = por %p106, %p107
      %s109 = ssub.s32 %s12, %s19
      %p110 = scmp.eq.s32.totalorder %s109, 0
      %s112 = sadd.s32 %s111, 1
      %s113 = scalar_select %p110, %s111, %s112
      %p116 = pneg %p110
      %p117 = scmp.eq.s32.totalorder %s12, 1
      %p118 = por %p116, %p117
      %p119 = scmp.ne.s32.totalorder %s111, %s114
      %p120 = scmp.eq.s32.totalorder %s12, 0
      %p121 = por %p119, %p120
      %p122 = scmp.ne.s32.totalorder %s111, %s114
      %p123 = scmp.eq.s32.totalorder %s17, 1
      %p124 = por %p122, %p123
      %p125 = scmp.ne.s32.totalorder %s114, %s115
      %p126 = scmp.eq.s32.totalorder %s17, 0
      %p127 = por %p125, %p126
      %p128 = scmp.ne.s32.totalorder %s114, %s115
      %p129 = scmp.eq.s32.totalorder %s18, 1
      %p130 = por %p128, %p129
      %p132 = scmp.ne.s32.totalorder %s115, %s131
      %p133 = scmp.eq.s32.totalorder %s18, 0
      %p134 = por %p132, %p133
      %p135 = scmp.le.s32.totalorder 1, %s12
      %p136 = scmp.lt.s32.totalorder %s12, 3
      %p137 = pnand %p135, %p136
      %p138 = pneg %p137
      // Predicated region
      $region9: #{tpu_custom_call.1} parent=5 // pred_check
        _
      $region10: #{tpu_custom_call.1} parent=5 // pred_check_branch
        %140 = sbr.rel (%p137) target = $region12
      $region11: #{tpu_custom_call.1} parent=5 // pred_region
        %s141 = ssub.s32 %s12, 1
        // Predicated region
        $region13: #{tpu_custom_call.1} parent=11 // pred_check
          %p142 = pneg %p59
        $region14: #{tpu_custom_call.1} parent=11 // pred_check_branch
          %144 = sbr.rel (%p142) target = $region16
        $region15: #{tpu_custom_call.1} parent=11 // pred_region
          _
        $region16: #{tpu_custom_call.1} parent=11 // pred_fallthru
          _
        // Predicated region
        $region17: #{tpu_custom_call.1} parent=11 // pred_check
          %p145 = pneg %p80
        $region18: #{tpu_custom_call.1} parent=11 // pred_check_branch
          %147 = sbr.rel (%p145) target = $region20
        $region19: #{tpu_custom_call.1} parent=11 // pred_region
          %149 = vsyncadd [#allocation3], 0
          %s150 = sshll.u32 %s2, 4
          %s151 = int_to_ptr.hbm [resolvable:$true] %s150
          %s152 = sshll.u32 [#allocation2], 4
          %s153 = int_to_ptr.vmem [resolvable:$true] %s152
          %158 = dma.hbm_to_vmem [thread:$0]  %s151, 1024, %s153, [#allocation3], 256, 256, 16
        $region20: #{tpu_custom_call.1} parent=11 // pred_fallthru
          _
        // Predicated region
        $region21: #{tpu_custom_call.1} parent=11 // pred_check
          %p159 = pneg %p101
        $region22: #{tpu_custom_call.1} parent=11 // pred_check_branch
          %161 = sbr.rel (%p159) target = $region24
        $region23: #{tpu_custom_call.1} parent=11 // pred_region
          %163 = vsyncadd [#allocation5], 0
          %s164 = sshll.u32 %s3, 4
          %s165 = int_to_ptr.hbm [resolvable:$true] %s164
          %s166 = sshll.u32 [#allocation4], 4
          %s167 = int_to_ptr.vmem [resolvable:$true] %s166
          %172 = dma.hbm_to_vmem [thread:$0]  %s165, 1024, %s167, [#allocation5], 256, 256, 16
        $region24: #{tpu_custom_call.1} parent=11 // pred_fallthru
          _
      $region12: #{tpu_custom_call.1} parent=5 // pred_fallthru
        _
      %p173 = scmp.lt.s32.totalorder %s12, 2
      // Predicated region
      $region25: #{tpu_custom_call.1} parent=5 // pred_check
        %p174 = pneg %p173
      $region26: #{tpu_custom_call.1} parent=5 // pred_check_branch
        %176 = sbr.rel (%p174) target = $region28
      $region27: #{tpu_custom_call.1} parent=5 // pred_region
        // Predicated region
        $region29: #{tpu_custom_call.1} parent=27 // pred_check
          %p177 = pneg %p32
        $region30: #{tpu_custom_call.1} parent=27 // pred_check_branch
          %179 = sbr.rel (%p177) target = $region32
        $region31: #{tpu_custom_call.1} parent=27 // pred_region
          %p180 = scmp.lt.s32.totalorder %s12, 1
          %s181 = scalar_select %p180, %s12, 1
          %s182 = smul.addr %s181, 8
          %s183 = smul.addr %s182, 8
          %s184 = scalar_lea.vmem %s0, %s183
        $region32: #{tpu_custom_call.1} parent=27 // pred_fallthru
          _
      $region28: #{tpu_custom_call.1} parent=5 // pred_fallthru
        _
      %p185 = scmp.le.s32.totalorder 1, %s12
      %p186 = scmp.lt.s32.totalorder %s12, 3
      %p187 = pnand %p185, %p186
      %p188 = pneg %p187
      // Predicated region
      $region33: #{tpu_custom_call.1} parent=5 // pred_check
        _
      $region34: #{tpu_custom_call.1} parent=5 // pred_check_branch
        %190 = sbr.rel (%p187) target = $region36
      $region35: #{tpu_custom_call.1} parent=5 // pred_region
        %s191 = ssub.s32 %s12, 1
        // Predicated region
        $region37: #{tpu_custom_call.1} parent=35 // pred_check
          %p192 = pneg %p80
        $region38: #{tpu_custom_call.1} parent=35 // pred_check_branch
          %194 = sbr.rel (%p192) target = $region40
        $region39: #{tpu_custom_call.1} parent=35 // pred_region
          %196 = dma.done [#allocation3], 1024
        $region40: #{tpu_custom_call.1} parent=35 // pred_fallthru
          _
        // Predicated region
        $region41: #{tpu_custom_call.1} parent=35 // pred_check
          %p197 = pneg %p101
        $region42: #{tpu_custom_call.1} parent=35 // pred_check_branch
          %199 = sbr.rel (%p197) target = $region44
        $region43: #{tpu_custom_call.1} parent=35 // pred_region
          %201 = dma.done [#allocation5], 1024
        $region44: #{tpu_custom_call.1} parent=35 // pred_fallthru
          _
        %p202 = scmp.lt.s32.totalorder %s17, 1
        %s203 = scalar_select %p202, %s17, 1
        %s204 = smul.addr %s203, 8
        %s205 = smul.addr %s204, 8
        %s206 = scalar_lea.vmem %s0, %s205
        %p207 = pneg %p38
        %p208 = pneg %p35
        %p209 = pneg %p59
        %p210 = pneg %p56
        %p211 = pneg %p80
        %p212 = pneg %p77
        %p213 = pneg %p101
        %p214 = pneg %p98
        %p215 = pneg %p127
        %p216 = pneg %p124
        %p217 = scmp.lt.s32.totalorder %s17, 1
        %s218 = scalar_select %p217, %s17, 1
        %s219 = smul.addr %s218, 4
        %s220 = smul.addr %s219, 8
        %s221 = scalar_lea.vmem %s4, %s220
        %p222 = scmp.lt.s32.totalorder %s17, 1
        %s223 = scalar_select %p222, %s17, 1
        %s224 = smul.addr %s223, 8
        %s225 = smul.addr %s224, 8
        %s226 = scalar_lea.vmem %s0, %s225
        %p227 = scmp.lt.s32.totalorder %s17, 1
        %s228 = scalar_select %p227, %s17, 1
        %s229 = smul.addr %s228, 4
        %s230 = smul.addr %s229, 8
        %s231 = scalar_lea.vmem %s4, %s230
        %v232 = vld [vmem:[%s226] sm:$0xff]
        %v233 = vld [vmem:[%s226 + $0x8] sm:$0xff]
        %v234 = vld [vmem:[%s226 + $0x10] sm:$0xff]
        %v235 = vld [vmem:[%s226 + $0x18] sm:$0xff]
        %v236 = vld [vmem:[%s226 + $0x20] sm:$0xff]
        %v237 = vld [vmem:[%s226 + $0x28] sm:$0xff]
        %v238 = vld [vmem:[%s226 + $0x30] sm:$0xff]
        %v239 = vld [vmem:[%s226 + $0x38] sm:$0xff]
        %v240 = vld [vmem:[%s1] sm:$0xff]
        %v241 = vld [vmem:[%s1 + $0x8] sm:$0xff]
        %v242 = vld [vmem:[%s1 + $0x10] sm:$0xff]
        %v243 = vld [vmem:[%s1 + $0x18] sm:$0xff]
        %v244 = vld [vmem:[%s1 + $0x20] sm:$0xff]
        %v245 = vld [vmem:[%s1 + $0x28] sm:$0xff]
        %v246 = vld [vmem:[%s1 + $0x30] sm:$0xff]
        %v247 = vld [vmem:[%s1 + $0x38] sm:$0xff]
        %v248 = vld [vmem:[%s1 + $0x40] sm:$0xff]
        %v249 = vld [vmem:[%s1 + $0x48] sm:$0xff]
        %v250 = vld [vmem:[%s1 + $0x50] sm:$0xff]
        %v251 = vld [vmem:[%s1 + $0x58] sm:$0xff]
        %260 = vrot.lane.b32.xlu0 %v232, 126
        %v261 = vpop.permute.xlu0 %260
        %262 = vrot.lane.b32.xlu0 %v233, 126
        %v263 = vpop.permute.xlu0 %262
        %264 = vrot.lane.b32.xlu0 %v234, 126
        %v265 = vpop.permute.xlu0 %264
        %266 = vrot.lane.b32.xlu0 %v235, 126
        %v267 = vpop.permute.xlu0 %266
        %268 = vrot.lane.b32.xlu0 %v236, 126
        %v269 = vpop.permute.xlu0 %268
        %270 = vrot.lane.b32.xlu0 %v237, 126
        %v271 = vpop.permute.xlu0 %270
        %272 = vrot.lane.b32.xlu0 %v238, 126
        %v273 = vpop.permute.xlu0 %272
        %274 = vrot.lane.b32.xlu0 %v239, 126
        %v275 = vpop.permute.xlu0 %274
        %284 = vrot.lane.b32.xlu0 %v232, 124
        %v285 = vpop.permute.xlu0 %284
        %286 = vrot.lane.b32.xlu0 %v233, 124
        %v287 = vpop.permute.xlu0 %286
        %288 = vrot.lane.b32.xlu0 %v234, 124
        %v289 = vpop.permute.xlu0 %288
        %290 = vrot.lane.b32.xlu0 %v235, 124
        %v291 = vpop.permute.xlu0 %290
        %292 = vrot.lane.b32.xlu0 %v236, 124
        %v293 = vpop.permute.xlu0 %292
        %294 = vrot.lane.b32.xlu0 %v237, 124
        %v295 = vpop.permute.xlu0 %294
        %296 = vrot.lane.b32.xlu0 %v238, 124
        %v297 = vpop.permute.xlu0 %296
        %298 = vrot.lane.b32.xlu0 %v239, 124
        %v299 = vpop.permute.xlu0 %298
        %308 = vrot.lane.b32.xlu0 %v232, 122
        %v309 = vpop.permute.xlu0 %308
        %310 = vrot.lane.b32.xlu0 %v233, 122
        %v311 = vpop.permute.xlu0 %310
        %312 = vrot.lane.b32.xlu0 %v234, 122
        %v313 = vpop.permute.xlu0 %312
        %314 = vrot.lane.b32.xlu0 %v235, 122
        %v315 = vpop.permute.xlu0 %314
        %316 = vrot.lane.b32.xlu0 %v236, 122
        %v317 = vpop.permute.xlu0 %316
        %318 = vrot.lane.b32.xlu0 %v237, 122
        %v319 = vpop.permute.xlu0 %318
        %320 = vrot.lane.b32.xlu0 %v238, 122
        %v321 = vpop.permute.xlu0 %320
        %322 = vrot.lane.b32.xlu0 %v239, 122
        %v323 = vpop.permute.xlu0 %322
        %332 = vrot.lane.b32.xlu0 %v232, 120
        %v333 = vpop.permute.xlu0 %332
        %334 = vrot.lane.b32.xlu0 %v233, 120
        %v335 = vpop.permute.xlu0 %334
        %336 = vrot.lane.b32.xlu0 %v234, 120
        %v337 = vpop.permute.xlu0 %336
        %338 = vrot.lane.b32.xlu0 %v235, 120
        %v339 = vpop.permute.xlu0 %338
        %340 = vrot.lane.b32.xlu0 %v236, 120
        %v341 = vpop.permute.xlu0 %340
        %342 = vrot.lane.b32.xlu0 %v237, 120
        %v343 = vpop.permute.xlu0 %342
        %344 = vrot.lane.b32.xlu0 %v238, 120
        %v345 = vpop.permute.xlu0 %344
        %346 = vrot.lane.b32.xlu0 %v239, 120
        %v347 = vpop.permute.xlu0 %346
        %vm356 = vcmask 523264
        %v358 = vsel %vm356, %v242, 0
        %v361 = vsel %vm356, %v245, 0
        %v364 = vsel %vm356, %v248, 0
        %v367 = vsel %vm356, %v251, 0
        %369 = vmatpush.msra.mxu0 %v275
        %370 = vmatpush.msra.mxu0 %v273
        %371 = vmatpush.msra.mxu0 %v271
        %372 = vmatpush.msra.mxu0 %v269
        %373 = vmatpush.msra.mxu0 %v267
        %374 = vmatpush.msra.mxu0 %v265
        %375 = vmatpush.msra.mxu0 %v263
        %376 = vmatpush.msra.mxu0 %v261
        %377 = vmatpush.msra.mxu0 %v239
        %378 = vmatpush.msra.mxu0 %v238
        %379 = vmatpush.msra.mxu0 %v237
        %380 = vmatpush.msra.mxu0 %v236
        %381 = vmatpush.msra.mxu0 %v235
        %382 = vmatpush.msra.mxu0 %v234
        %383 = vmatpush.msra.mxu0 %v233
        %384 = vmatpush.msra.mxu0 %v232
        %385 = vmatmul.f32.gmra.mxu0 %v240
        %v386 = vpop.f32.mrf.mxu0
        %v387 = vadd.f32 0.0, %v386
        %388 = vmatmul.f32.gmra.mxu0 %v243
        %v389 = vpop.f32.mrf.mxu0
        %v390 = vadd.f32 0.0, %v389
        %391 = vmatmul.f32.gmra.mxu0 %v246
        %v392 = vpop.f32.mrf.mxu0
        %v393 = vadd.f32 0.0, %v392
        %394 = vmatmul.f32.gmra.mxu0 %v249
        %v395 = vpop.f32.mrf.mxu0
        %v396 = vadd.f32 0.0, %v395
        %397 = vdwg.mxu0
        %398 = vmatpush.msra.mxu0 %v323
        %399 = vmatpush.msra.mxu0 %v321
        %400 = vmatpush.msra.mxu0 %v319
        %401 = vmatpush.msra.mxu0 %v317
        %402 = vmatpush.msra.mxu0 %v315
        %403 = vmatpush.msra.mxu0 %v313
        %404 = vmatpush.msra.mxu0 %v311
        %405 = vmatpush.msra.mxu0 %v309
        %406 = vmatpush.msra.mxu0 %v299
        %407 = vmatpush.msra.mxu0 %v297
        %408 = vmatpush.msra.mxu0 %v295
        %409 = vmatpush.msra.mxu0 %v293
        %410 = vmatpush.msra.mxu0 %v291
        %411 = vmatpush.msra.mxu0 %v289
        %412 = vmatpush.msra.mxu0 %v287
        %413 = vmatpush.msra.mxu0 %v285
        %414 = vmatmul.f32.gmra.mxu0 %v241
        %v415 = vpop.f32.mrf.mxu0
        %v416 = vadd.f32 %v387, %v415
        %417 = vmatmul.f32.gmra.mxu0 %v244
        %v418 = vpop.f32.mrf.mxu0
        %v419 = vadd.f32 %v390, %v418
        %420 = vmatmul.f32.gmra.mxu0 %v247
        %v421 = vpop.f32.mrf.mxu0
        %v422 = vadd.f32 %v393, %v421
        %423 = vmatmul.f32.gmra.mxu0 %v250
        %v424 = vpop.f32.mrf.mxu0
        %v425 = vadd.f32 %v396, %v424
        %426 = vdwg.mxu0
        %427 = vmatpush.msra.mxu0 0.0
        %428 = vmatpush.msra.mxu0 0.0
        %429 = vmatpush.msra.mxu0 0.0
        %430 = vmatpush.msra.mxu0 0.0
        %431 = vmatpush.msra.mxu0 0.0
        %432 = vmatpush.msra.mxu0 0.0
        %433 = vmatpush.msra.mxu0 0.0
        %434 = vmatpush.msra.mxu0 0.0
        %435 = vmatpush.msra.mxu0 %v347
        %436 = vmatpush.msra.mxu0 %v345
        %437 = vmatpush.msra.mxu0 %v343
        %438 = vmatpush.msra.mxu0 %v341
        %439 = vmatpush.msra.mxu0 %v339
        %440 = vmatpush.msra.mxu0 %v337
        %441 = vmatpush.msra.mxu0 %v335
        %442 = vmatpush.msra.mxu0 %v333
        %443 = vmatmul.f32.gmra.mxu0 %v358
        %v444 = vpop.f32.mrf.mxu0
        %v445 = vadd.f32 %v416, %v444
        %446 = vmatmul.f32.gmra.mxu0 %v361
        %v447 = vpop.f32.mrf.mxu0
        %v448 = vadd.f32 %v419, %v447
        %449 = vmatmul.f32.gmra.mxu0 %v364
        %v450 = vpop.f32.mrf.mxu0
        %v451 = vadd.f32 %v422, %v450
        %452 = vmatmul.f32.gmra.mxu0 %v367
        %v453 = vpop.f32.mrf.mxu0
        %v454 = vadd.f32 %v425, %v453
        %455 = vdwg.mxu0
        %vm456 = vcmask 23552
        %v457 = vsel %vm456, %v445, 0.0
        %458 = vadd.xlane.f32.xlu0 %v457
        %v459 = vpop.xlane.xlu0 %458
        %v460 = vsel %vm456, %v448, 0.0
        %461 = vadd.xlane.f32.xlu0 %v460
        %v462 = vpop.xlane.xlu0 %461
        %v463 = vsel %vm456, %v451, 0.0
        %464 = vadd.xlane.f32.xlu0 %v463
        %v465 = vpop.xlane.xlu0 %464
        %v466 = vsel %vm456, %v454, 0.0
        %467 = vadd.xlane.f32.xlu0 %v466
        %v468 = vpop.xlane.xlu0 %467
        %v469 = vmul.f32 %v445, %v445
        %v470 = vmul.f32 %v448, %v448
        %v471 = vmul.f32 %v451, %v451
        %v472 = vmul.f32 %v454, %v454
        %v473 = vsel %vm456, %v469, 0.0
        %474 = vadd.xlane.f32.xlu0 %v473
        %v475 = vpop.xlane.xlu0 %474
        %v476 = vsel %vm456, %v470, 0.0
        %477 = vadd.xlane.f32.xlu0 %v476
        %v478 = vpop.xlane.xlu0 %477
        %v479 = vsel %vm456, %v471, 0.0
        %480 = vadd.xlane.f32.xlu0 %v479
        %v481 = vpop.xlane.xlu0 %480
        %v482 = vsel %vm456, %v472, 0.0
        %483 = vadd.xlane.f32.xlu0 %v482
        %v484 = vpop.xlane.xlu0 %483
        %v485 = vld [vmem:[#allocation2] sm:$0xff]
        %v486 = vld [vmem:[#allocation2 + $0x8] sm:$0xff]
        %v487 = vld [vmem:[#allocation2 + $0x10] sm:$0xff]
        %v488 = vld [vmem:[#allocation2 + $0x18] sm:$0xff]
        %v489 = vld [vmem:[#allocation2 + $0x20] sm:$0xff]
        %v490 = vld [vmem:[#allocation2 + $0x28] sm:$0xff]
        %v491 = vld [vmem:[#allocation2 + $0x30] sm:$0xff]
        %v492 = vld [vmem:[#allocation2 + $0x38] sm:$0xff]
        %493 = vrot.lane.b32.xlu0 %v232, 125
        %v494 = vpop.permute.xlu0 %493
        %495 = vrot.lane.b32.xlu0 %v233, 125
        %v496 = vpop.permute.xlu0 %495
        %497 = vrot.lane.b32.xlu0 %v234, 125
        %v498 = vpop.permute.xlu0 %497
        %499 = vrot.lane.b32.xlu0 %v235, 125
        %v500 = vpop.permute.xlu0 %499
        %501 = vrot.lane.b32.xlu0 %v236, 125
        %v502 = vpop.permute.xlu0 %501
        %503 = vrot.lane.b32.xlu0 %v237, 125
        %v504 = vpop.permute.xlu0 %503
        %505 = vrot.lane.b32.xlu0 %v238, 125
        %v506 = vpop.permute.xlu0 %505
        %507 = vrot.lane.b32.xlu0 %v239, 125
        %v508 = vpop.permute.xlu0 %507
        %517 = vrot.lane.b32.xlu0 %v232, 119
        %v518 = vpop.permute.xlu0 %517
        %519 = vrot.lane.b32.xlu0 %v233, 119
        %v520 = vpop.permute.xlu0 %519
        %521 = vrot.lane.b32.xlu0 %v234, 119
        %v522 = vpop.permute.xlu0 %521
        %523 = vrot.lane.b32.xlu0 %v235, 119
        %v524 = vpop.permute.xlu0 %523
        %525 = vrot.lane.b32.xlu0 %v236, 119
        %v526 = vpop.permute.xlu0 %525
        %527 = vrot.lane.b32.xlu0 %v237, 119
        %v528 = vpop.permute.xlu0 %527
        %529 = vrot.lane.b32.xlu0 %v238, 119
        %v530 = vpop.permute.xlu0 %529
        %531 = vrot.lane.b32.xlu0 %v239, 119
        %v532 = vpop.permute.xlu0 %531
        %541 = vmatpush.msra.mxu0 %v508
        %542 = vmatpush.msra.mxu0 %v506
        %543 = vmatpush.msra.mxu0 %v504
        %544 = vmatpush.msra.mxu0 %v502
        %545 = vmatpush.msra.mxu0 %v500
        %546 = vmatpush.msra.mxu0 %v498
        %547 = vmatpush.msra.mxu0 %v496
        %548 = vmatpush.msra.mxu0 %v494
        %549 = vmatpush.msra.mxu0 %v239
        %550 = vmatpush.msra.mxu0 %v238
        %551 = vmatpush.msra.mxu0 %v237
        %552 = vmatpush.msra.mxu0 %v236
        %553 = vmatpush.msra.mxu0 %v235
        %554 = vmatpush.msra.mxu0 %v234
        %555 = vmatpush.msra.mxu0 %v233
        %556 = vmatpush.msra.mxu0 %v232
        %557 = vmatmul.f32.gmra.mxu0 %v485
        %v558 = vpop.f32.mrf.mxu0
        %v559 = vadd.f32 0.0, %v558
        %560 = vmatmul.f32.gmra.mxu0 %v487
        %v561 = vpop.f32.mrf.mxu0
        %v562 = vadd.f32 0.0, %v561
        %563 = vmatmul.f32.gmra.mxu0 %v489
        %v564 = vpop.f32.mrf.mxu0
        %v565 = vadd.f32 0.0, %v564
        %566 = vmatmul.f32.gmra.mxu0 %v491
        %v567 = vpop.f32.mrf.mxu0
        %v568 = vadd.f32 0.0, %v567
        %569 = vdwg.mxu0
        %570 = vmatpush.msra.mxu0 %v532
        %571 = vmatpush.msra.mxu0 %v530
        %572 = vmatpush.msra.mxu0 %v528
        %573 = vmatpush.msra.mxu0 %v526
        %574 = vmatpush.msra.mxu0 %v524
        %575 = vmatpush.msra.mxu0 %v522
        %576 = vmatpush.msra.mxu0 %v520
        %577 = vmatpush.msra.mxu0 %v518
        %578 = vmatpush.msra.mxu0 %v323
        %579 = vmatpush.msra.mxu0 %v321
        %580 = vmatpush.msra.mxu0 %v319
        %581 = vmatpush.msra.mxu0 %v317
        %582 = vmatpush.msra.mxu0 %v315
        %583 = vmatpush.msra.mxu0 %v313
        %584 = vmatpush.msra.mxu0 %v311
        %585 = vmatpush.msra.mxu0 %v309
        %586 = vmatmul.f32.gmra.mxu0 %v486
        %v587 = vpop.f32.mrf.mxu0
        %v588 = vadd.f32 %v559, %v587
        %589 = vmatmul.f32.gmra.mxu0 %v488
        %v590 = vpop.f32.mrf.mxu0
        %v591 = vadd.f32 %v562, %v590
        %592 = vmatmul.f32.gmra.mxu0 %v490
        %v593 = vpop.f32.mrf.mxu0
        %v594 = vadd.f32 %v565, %v593
        %595 = vmatmul.f32.gmra.mxu0 %v492
        %v596 = vpop.f32.mrf.mxu0
        %v597 = vadd.f32 %v568, %v596
        %598 = vdwg.mxu0
        %vm599 = vcmask 15360
        %v600 = vsel %vm599, %v588, 0.0
        %601 = vadd.xlane.f32.xlu0 %v600
        %v602 = vpop.xlane.xlu0 %601
        %v603 = vsel %vm599, %v591, 0.0
        %604 = vadd.xlane.f32.xlu0 %v603
        %v605 = vpop.xlane.xlu0 %604
        %v606 = vsel %vm599, %v594, 0.0
        %607 = vadd.xlane.f32.xlu0 %v606
        %v608 = vpop.xlane.xlu0 %607
        %v609 = vsel %vm599, %v597, 0.0
        %610 = vadd.xlane.f32.xlu0 %v609
        %v611 = vpop.xlane.xlu0 %610
        %v612 = vmul.f32 %v588, %v588
        %v613 = vmul.f32 %v591, %v591
        %v614 = vmul.f32 %v594, %v594
        %v615 = vmul.f32 %v597, %v597
        %v616 = vsel %vm599, %v612, 0.0
        %617 = vadd.xlane.f32.xlu0 %v616
        %v618 = vpop.xlane.xlu0 %617
        %v619 = vsel %vm599, %v613, 0.0
        %620 = vadd.xlane.f32.xlu0 %v619
        %v621 = vpop.xlane.xlu0 %620
        %v622 = vsel %vm599, %v614, 0.0
        %623 = vadd.xlane.f32.xlu0 %v622
        %v624 = vpop.xlane.xlu0 %623
        %v625 = vsel %vm599, %v615, 0.0
        %626 = vadd.xlane.f32.xlu0 %v625
        %v627 = vpop.xlane.xlu0 %626
        %v628 = vld [vmem:[#allocation4] sm:$0xff]
        %v629 = vld [vmem:[#allocation4 + $0x8] sm:$0xff]
        %v630 = vld [vmem:[#allocation4 + $0x10] sm:$0xff]
        %v631 = vld [vmem:[#allocation4 + $0x18] sm:$0xff]
        %v632 = vld [vmem:[#allocation4 + $0x20] sm:$0xff]
        %v633 = vld [vmem:[#allocation4 + $0x28] sm:$0xff]
        %v634 = vld [vmem:[#allocation4 + $0x30] sm:$0xff]
        %v635 = vld [vmem:[#allocation4 + $0x38] sm:$0xff]
        %v637 = vsel %vm356, %v629, 0
        %v640 = vsel %vm356, %v631, 0
        %v643 = vsel %vm356, %v633, 0
        %v646 = vsel %vm356, %v635, 0
        %648 = vmatpush.msra.mxu0 %v299
        %649 = vmatpush.msra.mxu0 %v297
        %650 = vmatpush.msra.mxu0 %v295
        %651 = vmatpush.msra.mxu0 %v293
        %652 = vmatpush.msra.mxu0 %v291
        %653 = vmatpush.msra.mxu0 %v289
        %654 = vmatpush.msra.mxu0 %v287
        %655 = vmatpush.msra.mxu0 %v285
        %656 = vmatpush.msra.mxu0 %v239
        %657 = vmatpush.msra.mxu0 %v238
        %658 = vmatpush.msra.mxu0 %v237
        %659 = vmatpush.msra.mxu0 %v236
        %660 = vmatpush.msra.mxu0 %v235
        %661 = vmatpush.msra.mxu0 %v234
        %662 = vmatpush.msra.mxu0 %v233
        %663 = vmatpush.msra.mxu0 %v232
        %664 = vmatmul.f32.gmra.mxu0 %v628
        %v665 = vpop.f32.mrf.mxu0
        %v666 = vadd.f32 0.0, %v665
        %667 = vmatmul.f32.gmra.mxu0 %v630
        %v668 = vpop.f32.mrf.mxu0
        %v669 = vadd.f32 0.0, %v668
        %670 = vmatmul.f32.gmra.mxu0 %v632
        %v671 = vpop.f32.mrf.mxu0
        %v672 = vadd.f32 0.0, %v671
        %673 = vmatmul.f32.gmra.mxu0 %v634
        %v674 = vpop.f32.mrf.mxu0
        %v675 = vadd.f32 0.0, %v674
        %676 = vdwg.mxu0
        %677 = vmatpush.msra.mxu0 0.0
        %678 = vmatpush.msra.mxu0 0.0
        %679 = vmatpush.msra.mxu0 0.0
        %680 = vmatpush.msra.mxu0 0.0
        %681 = vmatpush.msra.mxu0 0.0
        %682 = vmatpush.msra.mxu0 0.0
        %683 = vmatpush.msra.mxu0 0.0
        %684 = vmatpush.msra.mxu0 0.0
        %685 = vmatpush.msra.mxu0 %v347
        %686 = vmatpush.msra.mxu0 %v345
        %687 = vmatpush.msra.mxu0 %v343
        %688 = vmatpush.msra.mxu0 %v341
        %689 = vmatpush.msra.mxu0 %v339
        %690 = vmatpush.msra.mxu0 %v337
        %691 = vmatpush.msra.mxu0 %v335
        %692 = vmatpush.msra.mxu0 %v333
        %693 = vmatmul.f32.gmra.mxu0 %v637
        %v694 = vpop.f32.mrf.mxu0
        %v695 = vadd.f32 %v666, %v694
        %696 = vmatmul.f32.gmra.mxu0 %v640
        %v697 = vpop.f32.mrf.mxu0
        %v698 = vadd.f32 %v669, %v697
        %699 = vmatmul.f32.gmra.mxu0 %v643
        %v700 = vpop.f32.mrf.mxu0
        %v701 = vadd.f32 %v672, %v700
        %702 = vmatmul.f32.gmra.mxu0 %v646
        %v703 = vpop.f32.mrf.mxu0
        %v704 = vadd.f32 %v675, %v703
        %705 = vdwg.mxu0
        %v706 = vsel %vm456, %v695, 0.0
        %707 = vadd.xlane.f32.xlu0 %v706
        %v708 = vpop.xlane.xlu0 %707
        %v709 = vsel %vm456, %v698, 0.0
        %710 = vadd.xlane.f32.xlu0 %v709
        %v711 = vpop.xlane.xlu0 %710
        %v712 = vsel %vm456, %v701, 0.0
        %713 = vadd.xlane.f32.xlu0 %v712
        %v714 = vpop.xlane.xlu0 %713
        %v715 = vsel %vm456, %v704, 0.0
        %716 = vadd.xlane.f32.xlu0 %v715
        %v717 = vpop.xlane.xlu0 %716
        %v718 = vmul.f32 %v695, %v695
        %v719 = vmul.f32 %v698, %v698
        %v720 = vmul.f32 %v701, %v701
        %v721 = vmul.f32 %v704, %v704
        %v722 = vsel %vm456, %v718, 0.0
        %723 = vadd.xlane.f32.xlu0 %v722
        %v724 = vpop.xlane.xlu0 %723
        %v725 = vsel %vm456, %v719, 0.0
        %726 = vadd.xlane.f32.xlu0 %v725
        %v727 = vpop.xlane.xlu0 %726
        %v728 = vsel %vm456, %v720, 0.0
        %729 = vadd.xlane.f32.xlu0 %v728
        %v730 = vpop.xlane.xlu0 %729
        %v731 = vsel %vm456, %v721, 0.0
        %732 = vadd.xlane.f32.xlu0 %v731
        %v733 = vpop.xlane.xlu0 %732
        %vm734 = vcmask 7168
        %v735 = vsel %vm734, %v459, %v602
        %v736 = vsel %vm734, %v462, %v605
        %v737 = vsel %vm734, %v465, %v608
        %v738 = vsel %vm734, %v468, %v611
        %v739 = vsel %vm599, %v735, %v708
        %v740 = vsel %vm599, %v736, %v711
        %v741 = vsel %vm599, %v737, %v714
        %v742 = vsel %vm599, %v738, %v717
        %v743 = vsel %vm456, %v739, %v475
        %v744 = vsel %vm456, %v740, %v478
        %v745 = vsel %vm456, %v741, %v481
        %v746 = vsel %vm456, %v742, %v484
        %vm747 = vcmask 31744
        %v748 = vsel %vm747, %v743, %v618
        %v749 = vsel %vm747, %v744, %v621
        %v750 = vsel %vm747, %v745, %v624
        %v751 = vsel %vm747, %v746, %v627
        %vm752 = vcmask 39936
        %v753 = vsel %vm752, %v748, %v724
        %v754 = vsel %vm752, %v749, %v727
        %v755 = vsel %vm752, %v750, %v730
        %v756 = vsel %vm752, %v751, %v733
        %vm757 = vcmask 48128
        %758 = vst.msk [vmem:[%s231] sm:$0xff] %vm757, %v753
        %759 = vst.msk [vmem:[%s231 + $0x8] sm:$0xff] %vm757, %v754
        %760 = vst.msk [vmem:[%s231 + $0x10] sm:$0xff] %vm757, %v755
        %761 = vst.msk [vmem:[%s231 + $0x18] sm:$0xff] %vm757, %v756
        %p762 = scmp.lt.s32.totalorder %s17, 1
        %s763 = scalar_select %p762, %s17, 1
        %s764 = smul.addr %s763, 4
        %s765 = smul.addr %s764, 8
        %s766 = scalar_lea.vmem %s4, %s765
        // Predicated region
        $region45: #{tpu_custom_call.1} parent=35 // pred_check
          %p767 = pneg %p124
        $region46: #{tpu_custom_call.1} parent=35 // pred_check_branch
          %769 = sbr.rel (%p767) target = $region48
        $region47: #{tpu_custom_call.1} parent=35 // pred_region
          _
        $region48: #{tpu_custom_call.1} parent=35 // pred_fallthru
          _
      $region36: #{tpu_custom_call.1} parent=5 // pred_fallthru
        _
      %p770 = scmp.le.s32.totalorder 2, %s12
      // Predicated region
      $region49: #{tpu_custom_call.1} parent=5 // pred_check
        %p771 = pneg %p770
      $region50: #{tpu_custom_call.1} parent=5 // pred_check_branch
        %773 = sbr.rel (%p771) target = $region52
      $region51: #{tpu_custom_call.1} parent=5 // pred_region
        %s774 = ssub.s32 %s12, 2
        // Predicated region
        $region53: #{tpu_custom_call.1} parent=51 // pred_check
          %p775 = pneg %p130
        $region54: #{tpu_custom_call.1} parent=51 // pred_check_branch
          %777 = sbr.rel (%p775) target = $region56
        $region55: #{tpu_custom_call.1} parent=51 // pred_region
          %p778 = scmp.lt.s32.totalorder %s18, 1
          %s779 = scalar_select %p778, %s18, 1
          %s780 = smul.addr %s779, 4
          %s781 = smul.addr %s780, 8
          %s782 = scalar_lea.vmem %s4, %s781
        $region56: #{tpu_custom_call.1} parent=51 // pred_fallthru
          _
      $region52: #{tpu_custom_call.1} parent=5 // pred_fallthru
        _
    $region6: #{tpu_custom_call.1} parent=1 // loop_footer
      %s16 = sadd.s32 1, %s12
    $region7: #{tpu_custom_call.1} parent=1 // loop_footer_branch
      %11 = sbr.rel target = $region3
    $region8: #{tpu_custom_call.1} parent=1 // loop_exit
      _
    %783 = vsyncpa [#allocation3], 1
    %s784 = scalar_lea.sflag [#allocation3], 1
    %785 = vsyncpa %s784, 1
    %786 = vsyncpa [#allocation5], 1

</llo_original>
